<compile_context>
chip_gen: v7x
topology: tpu7x:2x2x1
jax: 0.10.0
libtpu: 0.0.40
codegen_flags: <defaults>
</compile_context>

<pallas_src>
import math

import jax
import jax.numpy as jnp
from jax.experimental import pallas as pl
from jax.experimental.pallas import tpu as pltpu


# ------------------------------ kernel bodies -------------------------------- #

def _make_linear_kernel(has_bias, acc_in_out, compute_dtype):
    """Ref order: x, w_t, [bias], out, [acc scratch]."""

    def kernel(x_ref, wt_ref, *rest):
        rest = list(rest)
        b_ref = rest.pop(0) if has_bias else None
        o_ref = rest[0]
        acc_ref = o_ref if acc_in_out else rest[1]

        k = pl.program_id(2)

        @pl.when(k == 0)
        def _init():
            if has_bias:
                # Fold bias (f32) into the accumulator init -- no epilogue add.
                acc_ref[...] = jnp.broadcast_to(
                    b_ref[...].astype(jnp.float32), acc_ref.shape)
            else:
                acc_ref[...] = jnp.zeros_like(acc_ref)

        xt = x_ref[...]
        wt = wt_ref[...]
        if compute_dtype is None:
            # Exact-f32 path (matches PyTorch F.linear numerics).
            acc_ref[...] += jnp.dot(xt, wt, preferred_element_type=jnp.float32,
                                    precision=jax.lax.Precision.HIGHEST)
        else:
            if xt.dtype != compute_dtype:
                xt = xt.astype(compute_dtype)
            if wt.dtype != compute_dtype:
                wt = wt.astype(compute_dtype)
            acc_ref[...] += jnp.dot(xt, wt, preferred_element_type=jnp.float32)

        if not acc_in_out:
            @pl.when(k == pl.num_programs(2) - 1)
            def _finish():
                o_ref[...] = acc_ref[...].astype(o_ref.dtype)

    return kernel


# -------------------------------- tiling ------------------------------------- #

def _round_up(v, m):
    return ((v + m - 1) // m) * m


def _pick_k_tile(K, preferred):
    """K tile must either divide K or be paired with zero-padding (the
    reduction axis may never read padded garbage)."""
    if K <= preferred:
        return K                         # full-K block (always a legal block)
    preferred = max(128, (preferred // 128) * 128)
    for tk in range(preferred, 127, -128):
        if K % tk == 0:
            return tk
    return preferred                     # caller zero-pads K up to a multiple


def _vmem_budget_and_cap():
    """Generation-aware scoped-VMEM sizing (v5e/v6e: 128 MiB, v7x: 64 MiB/TC)."""
    cap = 64 << 20                       # conservative fallback (v7x per TC)
    try:
        info = pltpu.get_tpu_info()
        cap = int(getattr(info, "vmem_capacity_bytes", cap))
    except Exception:
        pass
    return int(cap * 0.75), cap


# -------------------------------- wrapper ------------------------------------- #

def simple_linear(x, weight_t, bias=None, *, tile_m=512, tile_n=1024,
                  tile_k=1024, compute_dtype=jnp.bfloat16):
    """y = x @ weight_t (+ bias).

    `weight_t` is the nn.Linear weight pre-transposed ONCE to
    (in_features, out_features); it may be stored bf16 in HBM to halve the
    weight DMA. `bias` stays f32 end-to-end. `compute_dtype=None` gives exact
    f32 MXU numerics (slower)."""
    M, K = x.shape
    K2, N = weight_t.shape
    assert K == K2, (K, K2)

    out_dtype = x.dtype
    out_is_f32 = jnp.dtype(out_dtype) == jnp.float32

    tm = M if M <= tile_m else tile_m
    tn = N if N <= tile_n else tile_n
    # v7x has 2 TensorCores: expose >= 2 parallel blocks for small-M problems
    # by splitting N rather than leaving one core idle.
    if pl.cdiv(M, tm) == 1 and pl.cdiv(N, tn) == 1 and N >= 256:
        tn = _round_up(pl.cdiv(N, 2), 128)
    tk = _pick_k_tile(K, tile_k)

    budget, cap = _vmem_budget_and_cap()
    xb = jnp.dtype(x.dtype).itemsize
    wb = jnp.dtype(weight_t.dtype).itemsize
    ob = jnp.dtype(out_dtype).itemsize

    def _footprint(tm_, tn_, tk_):
        fb = 2 * (tm_ * tk_ * xb + tk_ * tn_ * wb + tm_ * tn_ * ob)
        if bias is not None:
            fb += 2 * tn_ * 4
        if not out_is_f32:
            fb += tm_ * tn_ * 4          # f32 scratch accumulator
        return fb

    # Shrink tk first, then tm; never tn (keep the output lane-dense).
    while _footprint(tm, tn, tk) > budget and tk >= 512 and tk % 256 == 0:
        tk //= 2
    while _footprint(tm, tn, tk) > budget and tm >= 512 and tm % 256 == 0:
        tm //= 2

    # The reduction axis may not read padded garbage -> zero-pad K if needed.
    if K % tk != 0:
        kp = _round_up(K, tk)
        x = jnp.pad(x, ((0, 0), (0, kp - K)))
        weight_t = jnp.pad(weight_t, ((0, kp - K), (0, 0)))
        K = kp

    grid = (pl.cdiv(M, tm), pl.cdiv(N, tn), pl.cdiv(K, tk))

    in_specs = [
        pl.BlockSpec((tm, tk), lambda i, j, k: (i, k)),   # x tile
        pl.BlockSpec((tk, tn), lambda i, j, k: (k, j)),   # W^T tile
    ]
    args = [x, weight_t]
    if bias is not None:
        b2d = bias if bias.ndim == 2 else bias.reshape(1, -1)
        if b2d.dtype != jnp.float32:
            b2d = b2d.astype(jnp.float32)
        in_specs.append(pl.BlockSpec((1, tn), lambda i, j, k: (0, j)))
        args.append(b2d)

    kernel = _make_linear_kernel(bias is not None, out_is_f32, compute_dtype)
    scratch_shapes = [] if out_is_f32 else [pltpu.VMEM((tm, tn), jnp.float32)]

    vmem_limit = int(min(max(int(_footprint(tm, tn, tk) * 1.3), 16 << 20), cap))

    return pl.pallas_call(
        kernel,
        out_shape=jax.ShapeDtypeStruct((M if False else x.shape[0], N), out_dtype),
        grid_spec=pltpu.PrefetchScalarGridSpec(
            num_scalar_prefetch=0,
            grid=grid,
            in_specs=in_specs,
            out_specs=pl.BlockSpec((tm, tn), lambda i, j, k: (i, j)),
            scratch_shapes=scratch_shapes,
        ),
        compiler_params=pltpu.CompilerParams(
            dimension_semantics=("parallel", "parallel", "arbitrary"),
            vmem_limit_bytes=vmem_limit,
        ),
    )(*args)


# ----------------------------- parameter init --------------------------------- #

def init_simple_linear_params(key, in_features, out_features, bias=True,
                              dtype=jnp.float32):
    """Matches SimpleLinear.reset_parameters():
    kaiming_uniform_(weight, nonlinearity='linear') -> U(-sqrt(3/fan_in), ...),
    bias -> 0.  Returns (weight (out,in), weight_t (in,out), bias (out,))."""
    bound = math.sqrt(3.0 / in_features)
    w = jax.random.uniform(key, (out_features, in_features), dtype=dtype,
                           minval=-bound, maxval=bound)
    w_t = jnp.asarray(w.T)               # pre-transpose once, outside hot path
    b = jnp.zeros((out_features,), dtype=jnp.float32) if bias else None
    return w, w_t, b


# ---------------------------------- demo --------------------------------------- #

if __name__ == "__main__":
    key = jax.random.PRNGKey(0)
    k1, k2, k3, k4, k5 = jax.random.split(key, 5)

    # 1) Small case matching the module spec (full-dim blocks, grid (1,1,1)),
    #    bias path, f32 output accumulated directly into o_ref.
    batch, in_features, out_features = 8, 32, 64
    x = jax.random.normal(k1, (batch, in_features), dtype=jnp.float32)
    w, w_t, _ = init_simple_linear_params(k2, in_features, out_features, bias=True)
    b = jax.random.normal(k3, (out_features,), dtype=jnp.float32) * 0.1
    y = jax.block_until_ready(simple_linear(x, w_t, b))
    y_ref = x @ w.T + b
    assert y.shape == (batch, out_features)
    assert jnp.allclose(y, y_ref, atol=2e-2, rtol=2e-2), \
        float(jnp.max(jnp.abs(y - y_ref)))

    # 2) Larger case: M/N/K tiling (partial trailing M and N blocks, 2 K steps),
    #    no-bias path, weight stored bf16 in HBM (halved weight DMA).
    M2, K2, N2 = 640, 1280, 1536
    x2 = jax.random.normal(k4, (M2, K2), dtype=jnp.float32)
    w2, w2_t, _ = init_simple_linear_params(k2, K2, N2, bias=False)
    y2 = jax.block_until_ready(simple_linear(x2, w2_t.astype(jnp.bfloat16), None))
    y2_ref = jnp.dot(x2, w2.T, precision="highest")
    assert y2.shape == (M2, N2)
    assert jnp.allclose(y2, y2_ref, atol=5e-2, rtol=5e-2), \
        float(jnp.max(jnp.abs(y2 - y2_ref)))

    # 3) Awkward K (no 128-multiple divisor below the K tile) -> zero-pad path,
    #    with the module's default zero bias.
    M3, K3, N3 = 16, 200, 128
    x3 = jax.random.normal(k5, (M3, K3), dtype=jnp.float32)
    w3, w3_t, b3 = init_simple_linear_params(k3, K3, N3, bias=True)
    y3 = jax.block_until_ready(simple_linear(x3, w3_t, b3, tile_k=128))
    y3_ref = x3 @ w3.T + b3
    assert jnp.allclose(y3, y3_ref, atol=2e-2, rtol=2e-2), \
        float(jnp.max(jnp.abs(y3 - y3_ref)))

    print("KERNEL_OK")
</pallas_src>

<mosaic_0001>
module attributes {stable_mosaic.version = 11 : i64} {
  func.func @kernel(%arg0: i32, %arg1: i32, %arg2: i32, %arg3: memref<8x32xf32, #tpu.memory_space<vmem>>, %arg4: memref<32x64xf32, #tpu.memory_space<vmem>>, %arg5: memref<1x64xf32, #tpu.memory_space<vmem>>, %arg6: memref<8x64xf32, #tpu.memory_space<vmem>>) attributes {dimension_semantics = [#tpu.dimension_semantics<parallel>, #tpu.dimension_semantics<parallel>, #tpu.dimension_semantics<arbitrary>], iteration_bounds = array<i64: 1, 1, 1>, scalar_prefetch = 0 : i64, scratch_operands = 0 : i64, tpu.core_type = #tpu.core_type<tc>, window_params = [{transform_indices = @transform_0, window_bounds = array<i64: 8, 32>}, {transform_indices = @transform_1, window_bounds = array<i64: 32, 64>}, {transform_indices = @transform_2, window_bounds = array<i64: 1, 64>}, {transform_indices = @transform_3, window_bounds = array<i64: 8, 64>}]} {
    %c0_i32 = arith.constant 0 : i32
    %0 = arith.cmpi eq, %arg2, %c0_i32 : i32
    %1 = arith.extui %0 : i1 to i32
    %c0_i32_0 = arith.constant 0 : i32
    %2 = arith.cmpi ne, %1, %c0_i32_0 : i32
    scf.if %2 {
      %c0_8 = arith.constant 0 : index
      %c0_9 = arith.constant 0 : index
      %11 = vector.load %arg5[%c0_8, %c0_9] : memref<1x64xf32, #tpu.memory_space<vmem>>, vector<1x64xf32>
      %12 = vector.shape_cast %11 : vector<1x64xf32> to vector<1x64xf32>
      %13 = vector.broadcast %12 : vector<1x64xf32> to vector<8x64xf32>
      %c0_10 = arith.constant 0 : index
      %c0_11 = arith.constant 0 : index
      %14 = vector.load %arg6[%c0_10, %c0_11] : memref<8x64xf32, #tpu.memory_space<vmem>>, vector<8x64xf32>
      tpu.vector_store %arg6[%c0_10, %c0_11], %13 {strides = array<i32>} : memref<8x64xf32, #tpu.memory_space<vmem>>, vector<8x64xf32>,
    } else {
    }
    %c0 = arith.constant 0 : index
    %c0_1 = arith.constant 0 : index
    %3 = vector.load %arg3[%c0, %c0_1] : memref<8x32xf32, #tpu.memory_space<vmem>>, vector<8x32xf32>
    %c0_2 = arith.constant 0 : index
    %c0_3 = arith.constant 0 : index
    %4 = vector.load %arg4[%c0_2, %c0_3] : memref<32x64xf32, #tpu.memory_space<vmem>>, vector<32x64xf32>
    %5 = arith.truncf %3 : vector<8x32xf32> to vector<8x32xbf16>
    %6 = arith.truncf %4 : vector<32x64xf32> to vector<32x64xbf16>
    %c0_4 = arith.constant 0 : index
    %c0_5 = arith.constant 0 : index
    %7 = vector.load %arg6[%c0_4, %c0_5] : memref<8x64xf32, #tpu.memory_space<vmem>>, vector<8x64xf32>
    %cst = arith.constant dense<0.000000e+00> : vector<8x64xf32>
    %8 = tpu.matmul %5, %6, %cst {dimension_numbers = #tpu.dot_dimension_numbers<[1], [0], [0], [1], [0, 0, 1, 1], [], []>} : vector<8x32xbf16>, vector<32x64xbf16>, vector<8x64xf32> -> vector<8x64xf32>
    %9 = arith.addf %7, %8 : vector<8x64xf32>
    %c0_6 = arith.constant 0 : index
    %c0_7 = arith.constant 0 : index
    %10 = vector.load %arg6[%c0_6, %c0_7] : memref<8x64xf32, #tpu.memory_space<vmem>>, vector<8x64xf32>
    tpu.vector_store %arg6[%c0_6, %c0_7], %9 {strides = array<i32>} : memref<8x64xf32, #tpu.memory_space<vmem>>, vector<8x64xf32>,
    return
  }
  func.func @transform_0(%arg0: i32, %arg1: i32, %arg2: i32) -> (i32, i32) {
    %c0_i32 = arith.constant 0 : i32
    return %arg0, %arg2 : i32, i32
  }
  func.func @transform_1(%arg0: i32, %arg1: i32, %arg2: i32) -> (i32, i32) {
    %c0_i32 = arith.constant 0 : i32
    return %arg2, %arg1 : i32, i32
  }
  func.func @transform_2(%arg0: i32, %arg1: i32, %arg2: i32) -> (i32, i32) {
    %c0_i32 = arith.constant 0 : i32
    %c0_i32_0 = arith.constant 0 : i32
    return %c0_i32, %arg1 : i32, i32
  }
  func.func @transform_3(%arg0: i32, %arg1: i32, %arg2: i32) -> (i32, i32) {
    %c0_i32 = arith.constant 0 : i32
    return %arg0, %arg1 : i32, i32
  }
}

</mosaic_0001>

<llo_original>
// kernel: tpu_custom_call.1
$region0: #{tpu_custom_call.1}
  #allocation0 [shape = 'u32[]', space=smem, size = 0x4, offset = 0x4, fixed_abs, tag = 'smem constant byte address 0x4 - core index']
  #allocation1 [shape = 'u32[144,128]{1,0:T(1,128)}', space=vmem, size = 0x12000, scoped, tag = 'internal scratch']
  %s0 = inlined_call_operand.hbm [shape: f32[8,32], index: 0, kind: input, shape index: {}]
  %s1 = inlined_call_operand.hbm [shape: f32[32,64], index: 1, kind: input, shape index: {}]
  %s2 = inlined_call_operand.vmem [shape: f32[1,64], index: 2, kind: input, shape index: {}]
  %s3 = inlined_call_operand.hbm [shape: f32[8,64], index: 3, kind: output, shape index: {}]
  %s4 = sld [smem:[#allocation0]]
  $region34: #{tpu_custom_call.1} parent=0
    _
  %s6 = ssub.s32 1, %s4
  %s7 = scalar_select 0, %s6, %s4
  $region1: #{tpu_custom_call.1} parent=0
    #allocation2 [shape = 'u8[4096]{0}', space=vmem, size = 0x1000, scoped, tag = 'input window, operand 0, single buffered']
    #allocation3 [shape = 's32[1]{0}', space=sflag, size = 0x4, scoped, tag = 'scoped memory for tpu_custom_call.1']
    #allocation4 [shape = 's32[1]{0}', space=sflag, size = 0x4, scoped, tag = 'scoped memory for tpu_custom_call.1']
    #allocation5 [shape = 'u8[16384]{0}', space=vmem, size = 0x4000, scoped, tag = 'input window, operand 1, single buffered']
    #allocation6 [shape = 's32[1]{0}', space=sflag, size = 0x4, scoped, tag = 'scoped memory for tpu_custom_call.1']
    #allocation7 [shape = 'u8[4096]{0}', space=vmem, size = 0x1000, scoped, tag = 'output window, operand 0, single buffered']
    %8 = vsyncpa [#allocation3], 0
    %9 = vsyncpa [#allocation6], 0
    %10 = vsyncpa [#allocation4], 0
    // Predicated region
    $region2: #{tpu_custom_call.1} parent=1 // pred_check
      _
    $region3: #{tpu_custom_call.1} parent=1 // pred_check_branch
      %12 = sbr.rel (0) target = $region5
    $region4: #{tpu_custom_call.1} parent=1 // pred_region
      %s14 = ssub.s32 128, 128
      %15 = vsyncadd [#allocation3], %s14
      %s17 = sshll.u32 [#allocation2], 4
      %s18 = int_to_ptr.vmem [resolvable:$true] %s17
      %20 = dma.hbm_to_vmem [thread:$0]  %s0, 128, %s18, [#allocation3]
    $region5: #{tpu_custom_call.1} parent=1 // pred_fallthru
      _
    // Predicated region
    $region6: #{tpu_custom_call.1} parent=1 // pred_check
      _
    $region7: #{tpu_custom_call.1} parent=1 // pred_check_branch
      %22 = sbr.rel (0) target = $region9
    $region8: #{tpu_custom_call.1} parent=1 // pred_region
      %s24 = ssub.s32 512, 512
      %25 = vsyncadd [#allocation6], %s24
      %s26 = sshll.u32 [#allocation5], 4
      %s27 = int_to_ptr.vmem [resolvable:$true] %s26
      %32 = dma.hbm_to_vmem [thread:$0]  %s1, 512, %s27, [#allocation6], 128, 128, 8
    $region9: #{tpu_custom_call.1} parent=1 // pred_fallthru
      _
    // Predicated region
    $region10: #{tpu_custom_call.1} parent=1 // pred_check
      _
    $region11: #{tpu_custom_call.1} parent=1 // pred_check_branch
      %34 = sbr.rel (0) target = $region13
    $region12: #{tpu_custom_call.1} parent=1 // pred_region
      _
    $region13: #{tpu_custom_call.1} parent=1 // pred_fallthru
      _
    // Predicated region
    $region14: #{tpu_custom_call.1} parent=1 // pred_check
      _
    $region15: #{tpu_custom_call.1} parent=1 // pred_check_branch
      %36 = sbr.rel (0) target = $region17
    $region16: #{tpu_custom_call.1} parent=1 // pred_region
      %37 = dma.done [#allocation3], 128
    $region17: #{tpu_custom_call.1} parent=1 // pred_fallthru
      _
    // Predicated region
    $region18: #{tpu_custom_call.1} parent=1 // pred_check
      _
    $region19: #{tpu_custom_call.1} parent=1 // pred_check_branch
      %39 = sbr.rel (0) target = $region21
    $region20: #{tpu_custom_call.1} parent=1 // pred_region
      %40 = dma.done [#allocation6], 512
    $region21: #{tpu_custom_call.1} parent=1 // pred_fallthru
      _
    %p42 = scmp.eq.s32.totalorder 0, 0
    // Predicated region
    $region22: #{tpu_custom_call.1} parent=1 // pred_check
      %p43 = pneg %p42
    $region23: #{tpu_custom_call.1} parent=1 // pred_check_branch
      %45 = sbr.rel (%p43) target = $region25
    $region24: #{tpu_custom_call.1} parent=1 // pred_region
      %v46 = vld [vmem:[%s2] sm:$0x1]
      %v48 = vlaneseq
      %v49 = vshrl.u32 %v48, 7
      %v50 = vsub.s32 0, %v49
      %v51 = vrot.slane %v46, %v50
      %vm53 = vcmask 523264
      %54 = vst.msk [vmem:[#allocation7] sm:$0xff] %vm53, %v51
    $region25: #{tpu_custom_call.1} parent=1 // pred_fallthru
      _
    %v55 = vld [vmem:[#allocation2] sm:$0xff]
    %v56 = vld [vmem:[#allocation5] sm:$0xff]
    %v57 = vld [vmem:[#allocation5 + $0x8] sm:$0xff]
    %v58 = vld [vmem:[#allocation5 + $0x10] sm:$0xff]
    %v59 = vld [vmem:[#allocation5 + $0x18] sm:$0xff]
    %v60 = vpack.c.bf16 %v55, %v55
    %v61 = vpack.c.bf16 %v57, %v56
    %v62 = vpack.c.bf16 %v59, %v58
    %v63 = vld [vmem:[#allocation7] sm:$0xff]
    %vm64 = vcmask 261120
    %v66 = vsel %vm64, %v60, 0
    %68 = vmatprep.subr.bf16.mxu0 0
    %69 = vmatpush1.bf16.msra.mxu0 %v61
    %70 = vmatprep.subr.bf16.mxu0 0
    %71 = vmatpush1.bf16.msra.mxu0 %v62
    %72 = vmatprep.subr.bf16.mxu0 0
    %73 = vmatpush1.bf16.msra.mxu0 0
    %74 = vmatprep.subr.bf16.mxu0 0
    %75 = vmatpush1.bf16.msra.mxu0 0
    %76 = vmatprep.subr.bf16.mxu0 0
    %77 = vmatpush1.bf16.msra.mxu0 0
    %78 = vmatprep.subr.bf16.mxu0 0
    %79 = vmatpush1.bf16.msra.mxu0 0
    %80 = vmatprep.subr.bf16.mxu0 0
    %81 = vmatpush1.bf16.msra.mxu0 0
    %82 = vmatprep.subr.bf16.mxu0 0
    %83 = vmatpush1.bf16.msra.mxu0 0
    %84 = vmatprep.subr.bf16.mxu0 0
    %85 = vmatpush1.bf16.msra.mxu0 0
    %86 = vmatprep.subr.bf16.mxu0 0
    %87 = vmatpush1.bf16.msra.mxu0 0
    %88 = vmatprep.subr.bf16.mxu0 0
    %89 = vmatpush1.bf16.msra.mxu0 0
    %90 = vmatprep.subr.bf16.mxu0 0
    %91 = vmatpush1.bf16.msra.mxu0 0
    %92 = vmatprep.subr.bf16.mxu0 0
    %93 = vmatpush1.bf16.msra.mxu0 0
    %94 = vmatprep.subr.bf16.mxu0 0
    %95 = vmatpush1.bf16.msra.mxu0 0
    %96 = vmatprep.subr.bf16.mxu0 0
    %97 = vmatpush1.bf16.msra.mxu0 0
    %98 = vmatprep.subr.bf16.mxu0 0
    %99 = vmatpush1.bf16.msra.mxu0 0
    %100 = vmatprep.mubr.bf16.mxu0 0
    %101 = vmatmul.mubr.bf16.gmra.mrb[0].mxu0 %v66
    %v102 = vpop.f32.mrb[0].mxu0
    %v103 = vadd.f32 0.0, %v102
    %v104 = vpop.f32.mrb[0].mxu0
    %v105 = vpop.f32.mrb[0].mxu0
    %v106 = vpop.f32.mrb[0].mxu0
    %107 = vdwg.mxu0
    %v108 = vadd.f32 %v63, %v103
    %vm109 = vcmask 523264
    %110 = vst.msk [vmem:[#allocation7] sm:$0xff] %vm109, %v108
    // Predicated region
    $region26: #{tpu_custom_call.1} parent=1 // pred_check
      _
    $region27: #{tpu_custom_call.1} parent=1 // pred_check_branch
      %112 = sbr.rel (0) target = $region29
    $region28: #{tpu_custom_call.1} parent=1 // pred_region
      %s114 = ssub.s32 128, 128
      %115 = vsyncadd [#allocation4], %s114
      %s117 = sshll.u32 [#allocation7], 4
      %s118 = int_to_ptr.vmem [resolvable:$true] %s117
      %120 = dma.vmem_to_hbm [thread:$0]  %s118, 128, %s3, [#allocation4]
    $region29: #{tpu_custom_call.1} parent=1 // pred_fallthru
      _
    // Predicated region
    $region30: #{tpu_custom_call.1} parent=1 // pred_check
      _
    $region31: #{tpu_custom_call.1} parent=1 // pred_check_branch
      %122 = sbr.rel (0) target = $region33
    $region32: #{tpu_custom_call.1} parent=1 // pred_region
      %123 = dma.done [#allocation4], 128
    $region33: #{tpu_custom_call.1} parent=1 // pred_fallthru
      _
    %124 = vsyncpa [#allocation3], 1
    %125 = vsyncpa [#allocation6], 1
    %126 = vsyncpa [#allocation4], 1

</llo_original>
